<compile_context>
chip_gen: v5e
topology: v5e:2x2
jax: 0.10.0
libtpu: 0.0.40
codegen_flags: <defaults>
</compile_context>

<pallas_src>
import functools

import jax
import jax.numpy as jnp
from jax import lax
from jax.experimental import pallas as pl
from jax.experimental.pallas import tpu as pltpu


# -----------------------------------------------------------------------------
# Fused Pallas kernel
# -----------------------------------------------------------------------------
def _item_encoder_kernel(types_ref, feat_ref, emb_ref, w_e_ref, w_f_ref, b_ref,
                         out_ref, *, n_groups, n_items, n_types):
    """Fused: embedding lookup + Linear + ReLU + max over items.

    types_ref : (M, 1)  int32   item-major rows (r = item_idx*n_groups + group)
    feat_ref  : (M, F)  f32     item features, same row order
    emb_ref   : (T, E)  f32     embedding table
    w_e_ref   : (E, H)  f32     embedding half of the fc weight
    w_f_ref   : (F, H)  f32     feature half of the fc weight
    b_ref     : (1, H)  f32     fc bias
    out_ref   : (n_groups, H)   per-(bs,na) pooled features
    """
    M = n_groups * n_items

    # Embedding lookup as a one-hot matmul (no gather needed on TPU).
    onehot = (types_ref[...] ==
              lax.broadcasted_iota(jnp.int32, (M, n_types), 1)).astype(jnp.float32)

    # Fold Embedding followed by the embed-half of the Linear: (T,E)@(E,H) once.
    type_proj = jnp.dot(emb_ref[...], w_e_ref[...],
                        preferred_element_type=jnp.float32)          # (T, H)

    h = jnp.dot(onehot, type_proj, preferred_element_type=jnp.float32)
    h = h + jnp.dot(feat_ref[...], w_f_ref[...],
                    preferred_element_type=jnp.float32)
    h = jnp.maximum(h + b_ref[...], 0.0)                             # bias + ReLU

    # Max over the item axis: item-major layout makes each item a contiguous,
    # sublane-aligned (n_groups, H) slab (n_groups padded to a multiple of 8).
    m = h[0:n_groups, :]
    for j in range(1, n_items):
        m = jnp.maximum(m, h[j * n_groups:(j + 1) * n_groups, :])
    out_ref[...] = m


# -----------------------------------------------------------------------------
# Wrapper (only tiny input reshapes happen outside the kernel)
# -----------------------------------------------------------------------------
def item_encoder_forward(params, item_type, item):
    """item_type: (bs, na, ni) int, item: (bs, na, ni, F) f32 -> (bs, na, H)."""
    bs, na, ni = item_type.shape
    F = item.shape[-1]
    emb = params["type_embedding"]                  # (T, E)
    W = params["fc_w"]                              # (E + F, H)
    b = params["fc_b"]                              # (H,)
    T, E = emb.shape
    H = W.shape[-1]

    G = bs * na
    Gp = ((G + 7) // 8) * 8                         # pad groups to sublane x8
    M = Gp * ni

    # Item-major flattening (glue on tiny inputs only; all compute is fused).
    types = item_type.reshape(G, ni).astype(jnp.int32)
    feats = item.reshape(G, ni, F).astype(jnp.float32)
    if Gp != G:
        types = jnp.pad(types, ((0, Gp - G), (0, 0)))
        feats = jnp.pad(feats, ((0, Gp - G), (0, 0), (0, 0)))
    types_t = jnp.transpose(types, (1, 0)).reshape(M, 1)
    feats_t = jnp.transpose(feats, (1, 0, 2)).reshape(M, F)

    w_e = W[:E, :]
    w_f = W[E:, :]
    b2 = b.reshape(1, H).astype(jnp.float32)

    kernel = functools.partial(_item_encoder_kernel,
                               n_groups=Gp, n_items=ni, n_types=T)
    out = pl.pallas_call(
        kernel,
        out_shape=jax.ShapeDtypeStruct((Gp, H), jnp.float32),
        grid=(1,),
        in_specs=[
            pl.BlockSpec((M, 1), lambda i: (0, 0)),
            pl.BlockSpec((M, F), lambda i: (0, 0)),
            pl.BlockSpec((T, E), lambda i: (0, 0)),
            pl.BlockSpec((E, H), lambda i: (0, 0)),
            pl.BlockSpec((F, H), lambda i: (0, 0)),
            pl.BlockSpec((1, H), lambda i: (0, 0)),
        ],
        out_specs=pl.BlockSpec((Gp, H), lambda i: (0, 0)),
        compiler_params=pltpu.CompilerParams(
            dimension_semantics=("arbitrary",)),
    )(types_t, feats_t, emb, w_e, w_f, b2)

    return out[:G].reshape(bs, na, H)


# -----------------------------------------------------------------------------
# Pure-JAX reference (matches the torch forward semantics)
# -----------------------------------------------------------------------------
def item_encoder_reference(params, item_type, item):
    emb, W, b = params["type_embedding"], params["fc_w"], params["fc_b"]
    e = jnp.take(emb, item_type.astype(jnp.int32), axis=0)        # (bs,na,ni,E)
    h = jnp.concatenate([e, item.astype(jnp.float32)], axis=-1)   # (bs,na,ni,E+F)
    h = jnp.einsum("...k,kh->...h", h, W, precision=lax.Precision.HIGHEST) + b
    h = jnp.maximum(h, 0.0)
    return jnp.max(h, axis=2)


# -----------------------------------------------------------------------------
# Deterministic synthetic parameters / inputs
# -----------------------------------------------------------------------------
if __name__ == "__main__":
    # ModelArchitecture: ITEM_NUM_TYPES=18, ITEM_NUM_FEATURES=11, type_hidden=32,
    # inventory of ni=12 items; n_item_hidden picked lane-dense (128).
    bs, na, ni = 2, 8, 12
    n_item_type, n_item_feature = 18, 11
    n_type_hidden, n_item_hidden = 32, 128
    n_fc_in = n_type_hidden + n_item_feature

    key = jax.random.PRNGKey(0)
    k_emb, k_w, k_b, k_t, k_f = jax.random.split(key, 5)
    params = {
        "type_embedding": jax.random.normal(
            k_emb, (n_item_type, n_type_hidden), dtype=jnp.float32),
        "fc_w": (jax.random.normal(k_w, (n_fc_in, n_item_hidden)) *
                 n_fc_in ** -0.5).astype(jnp.float32),
        "fc_b": (jax.random.uniform(k_b, (n_item_hidden,), minval=-1.0, maxval=1.0) *
                 n_fc_in ** -0.5).astype(jnp.float32),
    }
    item_type = jax.random.randint(k_t, (bs, na, ni), 0, n_item_type)
    item = jax.random.normal(k_f, (bs, na, ni, n_item_feature), dtype=jnp.float32)

    fwd = jax.jit(item_encoder_forward)
    out = jax.block_until_ready(fwd(params, item_type, item))
    ref = item_encoder_reference(params, item_type, item)

    assert out.shape == (bs, na, n_item_hidden), out.shape
    assert bool(jnp.all(jnp.isfinite(out)))
    assert bool(jnp.allclose(out, ref, rtol=2e-2, atol=2e-2)), \
        float(jnp.max(jnp.abs(out - ref)))
    print("KERNEL_OK")
</pallas_src>

<mosaic_0001>
module attributes {stable_mosaic.version = 11 : i64} {
  func.func @_item_encoder_kernel(%arg0: i32, %arg1: memref<192x1xi32, #tpu.memory_space<vmem>>, %arg2: memref<192x11xf32, #tpu.memory_space<vmem>>, %arg3: memref<18x32xf32, #tpu.memory_space<vmem>>, %arg4: memref<32x128xf32, #tpu.memory_space<vmem>>, %arg5: memref<11x128xf32, #tpu.memory_space<vmem>>, %arg6: memref<1x128xf32, #tpu.memory_space<vmem>>, %arg7: memref<16x128xf32, #tpu.memory_space<vmem>>) attributes {dimension_semantics = [#tpu.dimension_semantics<arbitrary>], iteration_bounds = array<i64: 1>, scalar_prefetch = 0 : i64, scratch_operands = 0 : i64, tpu.core_type = #tpu.core_type<tc>, window_params = [{pipeline_mode = #tpu.pipeline_mode<synchronous>, transform_indices = @transform_0, window_bounds = array<i64: 192, 1>}, {pipeline_mode = #tpu.pipeline_mode<synchronous>, transform_indices = @transform_1, window_bounds = array<i64: 192, 11>}, {pipeline_mode = #tpu.pipeline_mode<synchronous>, transform_indices = @transform_2, window_bounds = array<i64: 18, 32>}, {pipeline_mode = #tpu.pipeline_mode<synchronous>, transform_indices = @transform_3, window_bounds = array<i64: 32, 128>}, {pipeline_mode = #tpu.pipeline_mode<synchronous>, transform_indices = @transform_4, window_bounds = array<i64: 11, 128>}, {pipeline_mode = #tpu.pipeline_mode<synchronous>, transform_indices = @transform_5, window_bounds = array<i64: 1, 128>}, {pipeline_mode = #tpu.pipeline_mode<synchronous>, transform_indices = @transform_6, window_bounds = array<i64: 16, 128>}]} {
    %c0 = arith.constant 0 : index
    %c0_0 = arith.constant 0 : index
    %0 = vector.load %arg1[%c0, %c0_0] : memref<192x1xi32, #tpu.memory_space<vmem>>, vector<192x1xi32>
    %1 = tpu.iota {dimensions = array<i32: 1>} : vector<192x18xi32>
    %2 = vector.broadcast %0 : vector<192x1xi32> to vector<192x18xi32>
    %3 = arith.cmpi eq, %2, %1 : vector<192x18xi32>
    %4 = arith.extui %3 : vector<192x18xi1> to vector<192x18xi32>
    %5 = arith.sitofp %4 : vector<192x18xi32> to vector<192x18xf32>
    %c0_1 = arith.constant 0 : index
    %c0_2 = arith.constant 0 : index
    %6 = vector.load %arg3[%c0_1, %c0_2] : memref<18x32xf32, #tpu.memory_space<vmem>>, vector<18x32xf32>
    %c0_3 = arith.constant 0 : index
    %c0_4 = arith.constant 0 : index
    %7 = vector.load %arg4[%c0_3, %c0_4] : memref<32x128xf32, #tpu.memory_space<vmem>>, vector<32x128xf32>
    %cst = arith.constant dense<0.000000e+00> : vector<18x128xf32>
    %8 = tpu.matmul %6, %7, %cst {dimension_numbers = #tpu.dot_dimension_numbers<[1], [0], [0], [1], [0, 0, 1, 1], [], []>} : vector<18x32xf32>, vector<32x128xf32>, vector<18x128xf32> -> vector<18x128xf32>
    %cst_5 = arith.constant dense<0.000000e+00> : vector<192x128xf32>
    %9 = tpu.matmul %5, %8, %cst_5 {dimension_numbers = #tpu.dot_dimension_numbers<[1], [0], [0], [1], [0, 0, 1, 1], [], []>} : vector<192x18xf32>, vector<18x128xf32>, vector<192x128xf32> -> vector<192x128xf32>
    %c0_6 = arith.constant 0 : index
    %c0_7 = arith.constant 0 : index
    %10 = vector.load %arg2[%c0_6, %c0_7] : memref<192x11xf32, #tpu.memory_space<vmem>>, vector<192x11xf32>
    %c0_8 = arith.constant 0 : index
    %c0_9 = arith.constant 0 : index
    %11 = vector.load %arg5[%c0_8, %c0_9] : memref<11x128xf32, #tpu.memory_space<vmem>>, vector<11x128xf32>
    %cst_10 = arith.constant dense<0.000000e+00> : vector<192x128xf32>
    %12 = tpu.matmul %10, %11, %cst_10 {dimension_numbers = #tpu.dot_dimension_numbers<[1], [0], [0], [1], [0, 0, 1, 1], [], []>} : vector<192x11xf32>, vector<11x128xf32>, vector<192x128xf32> -> vector<192x128xf32>
    %13 = arith.addf %9, %12 : vector<192x128xf32>
    %c0_11 = arith.constant 0 : index
    %c0_12 = arith.constant 0 : index
    %14 = vector.load %arg6[%c0_11, %c0_12] : memref<1x128xf32, #tpu.memory_space<vmem>>, vector<1x128xf32>
    %15 = vector.broadcast %14 : vector<1x128xf32> to vector<192x128xf32>
    %16 = arith.addf %13, %15 : vector<192x128xf32>
    %cst_13 = arith.constant 0.000000e+00 : f32
    %17 = vector.broadcast %cst_13 : f32 to vector<192x128xf32>
    %18 = arith.maximumf %16, %17 : vector<192x128xf32>
    %19 = vector.extract_strided_slice %18 {offsets = [0, 0], sizes = [16, 128], strides = [1, 1]} : vector<192x128xf32> to vector<16x128xf32>
    %20 = vector.extract_strided_slice %18 {offsets = [16, 0], sizes = [16, 128], strides = [1, 1]} : vector<192x128xf32> to vector<16x128xf32>
    %21 = arith.maximumf %19, %20 : vector<16x128xf32>
    %22 = vector.extract_strided_slice %18 {offsets = [32, 0], sizes = [16, 128], strides = [1, 1]} : vector<192x128xf32> to vector<16x128xf32>
    %23 = arith.maximumf %21, %22 : vector<16x128xf32>
    %24 = vector.extract_strided_slice %18 {offsets = [48, 0], sizes = [16, 128], strides = [1, 1]} : vector<192x128xf32> to vector<16x128xf32>
    %25 = arith.maximumf %23, %24 : vector<16x128xf32>
    %26 = vector.extract_strided_slice %18 {offsets = [64, 0], sizes = [16, 128], strides = [1, 1]} : vector<192x128xf32> to vector<16x128xf32>
    %27 = arith.maximumf %25, %26 : vector<16x128xf32>
    %28 = vector.extract_strided_slice %18 {offsets = [80, 0], sizes = [16, 128], strides = [1, 1]} : vector<192x128xf32> to vector<16x128xf32>
    %29 = arith.maximumf %27, %28 : vector<16x128xf32>
    %30 = vector.extract_strided_slice %18 {offsets = [96, 0], sizes = [16, 128], strides = [1, 1]} : vector<192x128xf32> to vector<16x128xf32>
    %31 = arith.maximumf %29, %30 : vector<16x128xf32>
    %32 = vector.extract_strided_slice %18 {offsets = [112, 0], sizes = [16, 128], strides = [1, 1]} : vector<192x128xf32> to vector<16x128xf32>
    %33 = arith.maximumf %31, %32 : vector<16x128xf32>
    %34 = vector.extract_strided_slice %18 {offsets = [128, 0], sizes = [16, 128], strides = [1, 1]} : vector<192x128xf32> to vector<16x128xf32>
    %35 = arith.maximumf %33, %34 : vector<16x128xf32>
    %36 = vector.extract_strided_slice %18 {offsets = [144, 0], sizes = [16, 128], strides = [1, 1]} : vector<192x128xf32> to vector<16x128xf32>
    %37 = arith.maximumf %35, %36 : vector<16x128xf32>
    %38 = vector.extract_strided_slice %18 {offsets = [160, 0], sizes = [16, 128], strides = [1, 1]} : vector<192x128xf32> to vector<16x128xf32>
    %39 = arith.maximumf %37, %38 : vector<16x128xf32>
    %40 = vector.extract_strided_slice %18 {offsets = [176, 0], sizes = [16, 128], strides = [1, 1]} : vector<192x128xf32> to vector<16x128xf32>
    %41 = arith.maximumf %39, %40 : vector<16x128xf32>
    %c0_14 = arith.constant 0 : index
    %c0_15 = arith.constant 0 : index
    %42 = vector.load %arg7[%c0_14, %c0_15] : memref<16x128xf32, #tpu.memory_space<vmem>>, vector<16x128xf32>
    tpu.vector_store %arg7[%c0_14, %c0_15], %41 {strides = array<i32>} : memref<16x128xf32, #tpu.memory_space<vmem>>, vector<16x128xf32>,
    return
  }
  func.func @transform_0(%arg0: i32) -> (i32, i32) {
    %c0_i32 = arith.constant 0 : i32
    %c0_i32_0 = arith.constant 0 : i32
    %c0_i32_1 = arith.constant 0 : i32
    return %c0_i32, %c0_i32_0 : i32, i32
  }
  func.func @transform_1(%arg0: i32) -> (i32, i32) {
    %c0_i32 = arith.constant 0 : i32
    %c0_i32_0 = arith.constant 0 : i32
    %c0_i32_1 = arith.constant 0 : i32
    return %c0_i32, %c0_i32_0 : i32, i32
  }
  func.func @transform_2(%arg0: i32) -> (i32, i32) {
    %c0_i32 = arith.constant 0 : i32
    %c0_i32_0 = arith.constant 0 : i32
    %c0_i32_1 = arith.constant 0 : i32
    return %c0_i32, %c0_i32_0 : i32, i32
  }
  func.func @transform_3(%arg0: i32) -> (i32, i32) {
    %c0_i32 = arith.constant 0 : i32
    %c0_i32_0 = arith.constant 0 : i32
    %c0_i32_1 = arith.constant 0 : i32
    return %c0_i32, %c0_i32_0 : i32, i32
  }
  func.func @transform_4(%arg0: i32) -> (i32, i32) {
    %c0_i32 = arith.constant 0 : i32
    %c0_i32_0 = arith.constant 0 : i32
    %c0_i32_1 = arith.constant 0 : i32
    return %c0_i32, %c0_i32_0 : i32, i32
  }
  func.func @transform_5(%arg0: i32) -> (i32, i32) {
    %c0_i32 = arith.constant 0 : i32
    %c0_i32_0 = arith.constant 0 : i32
    %c0_i32_1 = arith.constant 0 : i32
    return %c0_i32, %c0_i32_0 : i32, i32
  }
  func.func @transform_6(%arg0: i32) -> (i32, i32) {
    %c0_i32 = arith.constant 0 : i32
    %c0_i32_0 = arith.constant 0 : i32
    %c0_i32_1 = arith.constant 0 : i32
    return %c0_i32, %c0_i32_0 : i32, i32
  }
}

</mosaic_0001>

<llo_original>
// kernel: item_encoder_forward.1
$region0: #{item_encoder_forward.1}
  #allocation0 [shape = 'u32[]', space=smem, size = 0x4, offset = 0x4, fixed_abs, tag = 'smem constant byte address 0x4 - core index']
  #allocation1 [shape = 'u32[72,128]{1,0:T(1,128)}', space=vmem, size = 0x9000, scoped, tag = 'internal scratch']
  %s0 = inlined_call_operand.vmem [shape: s32[192,1], index: 0, kind: input, shape index: {}]
  %s1 = inlined_call_operand.vmem [shape: f32[192,11], index: 1, kind: input, shape index: {}]
  %s2 = inlined_call_operand.vmem [shape: f32[18,32], index: 2, kind: input, shape index: {}]
  %s3 = inlined_call_operand.vmem [shape: f32[32,128], index: 3, kind: input, shape index: {}]
  %s4 = inlined_call_operand.vmem [shape: f32[11,128], index: 4, kind: input, shape index: {}]
  %s5 = inlined_call_operand.vmem [shape: f32[1,128], index: 5, kind: input, shape index: {}]
  %s6 = inlined_call_operand.hbm [shape: f32[16,128], index: 6, kind: output, shape index: {}]
  %s7 = sld [smem:[#allocation0]]
  $region34: #{item_encoder_forward.1} parent=0
    _
  %s9 = ssub.s32 1, %s7
  %s10 = scalar_select 0, %s9, %s7
  $region1: #{item_encoder_forward.1} parent=0
    #allocation2 [shape = 'u8[8192]{0}', space=vmem, size = 0x2000, scoped, tag = 'output window, operand 0, single buffered']
    #allocation3 [shape = 's32[1]{0}', space=sflag, size = 0x4, scoped, tag = 'scoped memory for item_encoder_forward.1']
    %11 = vsyncpa [#allocation3], 0
    // Predicated region
    $region2: #{item_encoder_forward.1} parent=1 // pred_check
      _
    $region3: #{item_encoder_forward.1} parent=1 // pred_check_branch
      %13 = sbr.rel (0) target = $region5
    $region4: #{item_encoder_forward.1} parent=1 // pred_region
      _
    $region5: #{item_encoder_forward.1} parent=1 // pred_fallthru
      _
    // Predicated region
    $region6: #{item_encoder_forward.1} parent=1 // pred_check
      _
    $region7: #{item_encoder_forward.1} parent=1 // pred_check_branch
      %15 = sbr.rel (0) target = $region9
    $region8: #{item_encoder_forward.1} parent=1 // pred_region
      _
    $region9: #{item_encoder_forward.1} parent=1 // pred_fallthru
      _
    // Predicated region
    $region10: #{item_encoder_forward.1} parent=1 // pred_check
      _
    $region11: #{item_encoder_forward.1} parent=1 // pred_check_branch
      %17 = sbr.rel (0) target = $region13
    $region12: #{item_encoder_forward.1} parent=1 // pred_region
      _
    $region13: #{item_encoder_forward.1} parent=1 // pred_fallthru
      _
    // Predicated region
    $region14: #{item_encoder_forward.1} parent=1 // pred_check
      _
    $region15: #{item_encoder_forward.1} parent=1 // pred_check_branch
      %19 = sbr.rel (0) target = $region17
    $region16: #{item_encoder_forward.1} parent=1 // pred_region
      _
    $region17: #{item_encoder_forward.1} parent=1 // pred_fallthru
      _
    // Predicated region
    $region18: #{item_encoder_forward.1} parent=1 // pred_check
      _
    $region19: #{item_encoder_forward.1} parent=1 // pred_check_branch
      %21 = sbr.rel (0) target = $region21
    $region20: #{item_encoder_forward.1} parent=1 // pred_region
      _
    $region21: #{item_encoder_forward.1} parent=1 // pred_fallthru
      _
    // Predicated region
    $region22: #{item_encoder_forward.1} parent=1 // pred_check
      _
    $region23: #{item_encoder_forward.1} parent=1 // pred_check_branch
      %23 = sbr.rel (0) target = $region25
    $region24: #{item_encoder_forward.1} parent=1 // pred_region
      _
    $region25: #{item_encoder_forward.1} parent=1 // pred_fallthru
      _
    %v24 = vld [vmem:[%s0] sm:$0xff]
    %v25 = vld [vmem:[%s0 + $0x8] sm:$0xff]
    %v26 = vld [vmem:[%s0 + $0x10] sm:$0xff]
    %v27 = vld [vmem:[%s0 + $0x18] sm:$0xff]
    %v28 = vld [vmem:[%s0 + $0x20] sm:$0xff]
    %v29 = vld [vmem:[%s0 + $0x28] sm:$0xff]
    %v30 = vld [vmem:[%s0 + $0x30] sm:$0xff]
    %v31 = vld [vmem:[%s0 + $0x38] sm:$0xff]
    %v32 = vld [vmem:[%s0 + $0x40] sm:$0xff]
    %v33 = vld [vmem:[%s0 + $0x48] sm:$0xff]
    %v34 = vld [vmem:[%s0 + $0x50] sm:$0xff]
    %v35 = vld [vmem:[%s0 + $0x58] sm:$0xff]
    %v36 = vld [vmem:[%s0 + $0x60] sm:$0xff]
    %v37 = vld [vmem:[%s0 + $0x68] sm:$0xff]
    %v38 = vld [vmem:[%s0 + $0x70] sm:$0xff]
    %v39 = vld [vmem:[%s0 + $0x78] sm:$0xff]
    %v40 = vld [vmem:[%s0 + $0x80] sm:$0xff]
    %v41 = vld [vmem:[%s0 + $0x88] sm:$0xff]
    %v42 = vld [vmem:[%s0 + $0x90] sm:$0xff]
    %v43 = vld [vmem:[%s0 + $0x98] sm:$0xff]
    %v44 = vld [vmem:[%s0 + $0xa0] sm:$0xff]
    %v45 = vld [vmem:[%s0 + $0xa8] sm:$0xff]
    %v46 = vld [vmem:[%s0 + $0xb0] sm:$0xff]
    %v47 = vld [vmem:[%s0 + $0xb8] sm:$0xff]
    %v48 = vlaneseq
    %v49 = vand.u32 %v48, 127
    %50 = vset.pattern.permute.xlu0 0
    %51 = vperm.xlu0 %50, %v24
    %v52 = vpop.permute.xlu0 %51
    %53 = vset.pattern.permute.xlu0 0
    %54 = vperm.xlu0 %53, %v25
    %v55 = vpop.permute.xlu0 %54
    %56 = vset.pattern.permute.xlu0 0
    %57 = vperm.xlu0 %56, %v26
    %v58 = vpop.permute.xlu0 %57
    %59 = vset.pattern.permute.xlu0 0
    %60 = vperm.xlu0 %59, %v27
    %v61 = vpop.permute.xlu0 %60
    %62 = vset.pattern.permute.xlu0 0
    %63 = vperm.xlu0 %62, %v28
    %v64 = vpop.permute.xlu0 %63
    %65 = vset.pattern.permute.xlu0 0
    %66 = vperm.xlu0 %65, %v29
    %v67 = vpop.permute.xlu0 %66
    %68 = vset.pattern.permute.xlu0 0
    %69 = vperm.xlu0 %68, %v30
    %v70 = vpop.permute.xlu0 %69
    %71 = vset.pattern.permute.xlu0 0
    %72 = vperm.xlu0 %71, %v31
    %v73 = vpop.permute.xlu0 %72
    %74 = vset.pattern.permute.xlu0 0
    %75 = vperm.xlu0 %74, %v32
    %v76 = vpop.permute.xlu0 %75
    %77 = vset.pattern.permute.xlu0 0
    %78 = vperm.xlu0 %77, %v33
    %v79 = vpop.permute.xlu0 %78
    %80 = vset.pattern.permute.xlu0 0
    %81 = vperm.xlu0 %80, %v34
    %v82 = vpop.permute.xlu0 %81
    %83 = vset.pattern.permute.xlu0 0
    %84 = vperm.xlu0 %83, %v35
    %v85 = vpop.permute.xlu0 %84
    %86 = vset.pattern.permute.xlu0 0
    %87 = vperm.xlu0 %86, %v36
    %v88 = vpop.permute.xlu0 %87
    %89 = vset.pattern.permute.xlu0 0
    %90 = vperm.xlu0 %89, %v37
    %v91 = vpop.permute.xlu0 %90
    %92 = vset.pattern.permute.xlu0 0
    %93 = vperm.xlu0 %92, %v38
    %v94 = vpop.permute.xlu0 %93
    %95 = vset.pattern.permute.xlu0 0
    %96 = vperm.xlu0 %95, %v39
    %v97 = vpop.permute.xlu0 %96
    %98 = vset.pattern.permute.xlu0 0
    %99 = vperm.xlu0 %98, %v40
    %v100 = vpop.permute.xlu0 %99
    %101 = vset.pattern.permute.xlu0 0
    %102 = vperm.xlu0 %101, %v41
    %v103 = vpop.permute.xlu0 %102
    %104 = vset.pattern.permute.xlu0 0
    %105 = vperm.xlu0 %104, %v42
    %v106 = vpop.permute.xlu0 %105
    %107 = vset.pattern.permute.xlu0 0
    %108 = vperm.xlu0 %107, %v43
    %v109 = vpop.permute.xlu0 %108
    %110 = vset.pattern.permute.xlu0 0
    %111 = vperm.xlu0 %110, %v44
    %v112 = vpop.permute.xlu0 %111
    %113 = vset.pattern.permute.xlu0 0
    %114 = vperm.xlu0 %113, %v45
    %v115 = vpop.permute.xlu0 %114
    %116 = vset.pattern.permute.xlu0 0
    %117 = vperm.xlu0 %116, %v46
    %v118 = vpop.permute.xlu0 %117
    %119 = vset.pattern.permute.xlu0 0
    %120 = vperm.xlu0 %119, %v47
    %v121 = vpop.permute.xlu0 %120
    %vm122 = vcmp.eq.s32.totalorder %v52, %v49
    %vm123 = vcmp.eq.s32.totalorder %v55, %v49
    %vm124 = vcmp.eq.s32.totalorder %v58, %v49
    %vm125 = vcmp.eq.s32.totalorder %v61, %v49
    %vm126 = vcmp.eq.s32.totalorder %v64, %v49
    %vm127 = vcmp.eq.s32.totalorder %v67, %v49
    %vm128 = vcmp.eq.s32.totalorder %v70, %v49
    %vm129 = vcmp.eq.s32.totalorder %v73, %v49
    %vm130 = vcmp.eq.s32.totalorder %v76, %v49
    %vm131 = vcmp.eq.s32.totalorder %v79, %v49
    %vm132 = vcmp.eq.s32.totalorder %v82, %v49
    %vm133 = vcmp.eq.s32.totalorder %v85, %v49
    %vm134 = vcmp.eq.s32.totalorder %v88, %v49
    %vm135 = vcmp.eq.s32.totalorder %v91, %v49
    %vm136 = vcmp.eq.s32.totalorder %v94, %v49
    %vm137 = vcmp.eq.s32.totalorder %v97, %v49
    %vm138 = vcmp.eq.s32.totalorder %v100, %v49
    %vm139 = vcmp.eq.s32.totalorder %v103, %v49
    %vm140 = vcmp.eq.s32.totalorder %v106, %v49
    %vm141 = vcmp.eq.s32.totalorder %v109, %v49
    %vm142 = vcmp.eq.s32.totalorder %v112, %v49
    %vm143 = vcmp.eq.s32.totalorder %v115, %v49
    %vm144 = vcmp.eq.s32.totalorder %v118, %v49
    %vm145 = vcmp.eq.s32.totalorder %v121, %v49
    %v146 = vsel %vm122, 1, 0
    %v147 = vsel %vm123, 1, 0
    %v148 = vsel %vm124, 1, 0
    %v149 = vsel %vm125, 1, 0
    %v150 = vsel %vm126, 1, 0
    %v151 = vsel %vm127, 1, 0
    %v152 = vsel %vm128, 1, 0
    %v153 = vsel %vm129, 1, 0
    %v154 = vsel %vm130, 1, 0
    %v155 = vsel %vm131, 1, 0
    %v156 = vsel %vm132, 1, 0
    %v157 = vsel %vm133, 1, 0
    %v158 = vsel %vm134, 1, 0
    %v159 = vsel %vm135, 1, 0
    %v160 = vsel %vm136, 1, 0
    %v161 = vsel %vm137, 1, 0
    %v162 = vsel %vm138, 1, 0
    %v163 = vsel %vm139, 1, 0
    %v164 = vsel %vm140, 1, 0
    %v165 = vsel %vm141, 1, 0
    %v166 = vsel %vm142, 1, 0
    %v167 = vsel %vm143, 1, 0
    %v168 = vsel %vm144, 1, 0
    %v169 = vsel %vm145, 1, 0
    %v170 = vcvt.s32.f32 %v146
    %v171 = vcvt.s32.f32 %v147
    %v172 = vcvt.s32.f32 %v148
    %v173 = vcvt.s32.f32 %v149
    %v174 = vcvt.s32.f32 %v150
    %v175 = vcvt.s32.f32 %v151
    %v176 = vcvt.s32.f32 %v152
    %v177 = vcvt.s32.f32 %v153
    %v178 = vcvt.s32.f32 %v154
    %v179 = vcvt.s32.f32 %v155
    %v180 = vcvt.s32.f32 %v156
    %v181 = vcvt.s32.f32 %v157
    %v182 = vcvt.s32.f32 %v158
    %v183 = vcvt.s32.f32 %v159
    %v184 = vcvt.s32.f32 %v160
    %v185 = vcvt.s32.f32 %v161
    %v186 = vcvt.s32.f32 %v162
    %v187 = vcvt.s32.f32 %v163
    %v188 = vcvt.s32.f32 %v164
    %v189 = vcvt.s32.f32 %v165
    %v190 = vcvt.s32.f32 %v166
    %v191 = vcvt.s32.f32 %v167
    %v192 = vcvt.s32.f32 %v168
    %v193 = vcvt.s32.f32 %v169
    %v194 = vld [vmem:[%s2] sm:$0xff]
    %v195 = vld [vmem:[%s2 + $0x8] sm:$0xff]
    %v196 = vld [vmem:[%s2 + $0x10] sm:$0x3]
    %v197 = vld [vmem:[%s3] sm:$0xff]
    %v198 = vld [vmem:[%s3 + $0x8] sm:$0xff]
    %v199 = vld [vmem:[%s3 + $0x10] sm:$0xff]
    %v200 = vld [vmem:[%s3 + $0x18] sm:$0xff]
    %vm201 = vcmask 261120
    %v203 = vsel %vm201, %v194, 0
    %v206 = vsel %vm201, %v195, 0
    %v209 = vsel %vm201, %v196, 0
    %211 = vmatpush.msra.mxu0 0.0
    %212 = vmatpush.msra.mxu0 0.0
    %213 = vmatpush.msra.mxu0 0.0
    %214 = vmatpush.msra.mxu0 0.0
    %215 = vmatpush.msra.mxu0 0.0
    %216 = vmatpush.msra.mxu0 0.0
    %217 = vmatpush.msra.mxu0 0.0
    %218 = vmatpush.msra.mxu0 0.0
    %219 = vmatpush.msra.mxu0 0.0
    %220 = vmatpush.msra.mxu0 0.0
    %221 = vmatpush.msra.mxu0 0.0
    %222 = vmatpush.msra.mxu0 0.0
    %223 = vmatpush.msra.mxu0 %v200
    %224 = vmatpush.msra.mxu0 %v199
    %225 = vmatpush.msra.mxu0 %v198
    %226 = vmatpush.msra.mxu0 %v197
    %227 = vmatmul.f32.gmra.mxu0 %v203
    %v228 = vpop.f32.mrf.mxu0
    %v229 = vadd.f32 0.0, %v228
    %230 = vmatmul.f32.gmra.mxu0 %v206
    %v231 = vpop.f32.mrf.mxu0
    %v232 = vadd.f32 0.0, %v231
    %233 = vmatmul.f32.gmra.mxu0 %v209
    %v234 = vpop.f32.mrf.mxu0
    %v235 = vadd.f32 0.0, %v234
    %236 = vdwg.mxu0
    %v237 = vld [vmem:[%s1] sm:$0xff]
    %v238 = vld [vmem:[%s1 + $0x8] sm:$0xff]
    %v239 = vld [vmem:[%s1 + $0x10] sm:$0xff]
    %v240 = vld [vmem:[%s1 + $0x18] sm:$0xff]
    %v241 = vld [vmem:[%s1 + $0x20] sm:$0xff]
    %v242 = vld [vmem:[%s1 + $0x28] sm:$0xff]
    %v243 = vld [vmem:[%s1 + $0x30] sm:$0xff]
    %v244 = vld [vmem:[%s1 + $0x38] sm:$0xff]
    %v245 = vld [vmem:[%s1 + $0x40] sm:$0xff]
    %v246 = vld [vmem:[%s1 + $0x48] sm:$0xff]
    %v247 = vld [vmem:[%s1 + $0x50] sm:$0xff]
    %v248 = vld [vmem:[%s1 + $0x58] sm:$0xff]
    %v249 = vld [vmem:[%s1 + $0x60] sm:$0xff]
    %v250 = vld [vmem:[%s1 + $0x68] sm:$0xff]
    %v251 = vld [vmem:[%s1 + $0x70] sm:$0xff]
    %v252 = vld [vmem:[%s1 + $0x78] sm:$0xff]
    %v253 = vld [vmem:[%s1 + $0x80] sm:$0xff]
    %v254 = vld [vmem:[%s1 + $0x88] sm:$0xff]
    %v255 = vld [vmem:[%s1 + $0x90] sm:$0xff]
    %v256 = vld [vmem:[%s1 + $0x98] sm:$0xff]
    %v257 = vld [vmem:[%s1 + $0xa0] sm:$0xff]
    %v258 = vld [vmem:[%s1 + $0xa8] sm:$0xff]
    %v259 = vld [vmem:[%s1 + $0xb0] sm:$0xff]
    %v260 = vld [vmem:[%s1 + $0xb8] sm:$0xff]
    %v261 = vld [vmem:[%s4] sm:$0xff]
    %v262 = vld [vmem:[%s4 + $0x8] sm:$0x7]
    %vm263 = vcmask 89088
    %v265 = vsel %vm263, %v237, 0
    %v268 = vsel %vm263, %v238, 0
    %v271 = vsel %vm263, %v239, 0
    %v274 = vsel %vm263, %v240, 0
    %v277 = vsel %vm263, %v241, 0
    %v280 = vsel %vm263, %v242, 0
    %v283 = vsel %vm263, %v243, 0
    %v286 = vsel %vm263, %v244, 0
    %v289 = vsel %vm263, %v245, 0
    %v292 = vsel %vm263, %v246, 0
    %v295 = vsel %vm263, %v247, 0
    %v298 = vsel %vm263, %v248, 0
    %v301 = vsel %vm263, %v249, 0
    %v304 = vsel %vm263, %v250, 0
    %v307 = vsel %vm263, %v251, 0
    %v310 = vsel %vm263, %v252, 0
    %v313 = vsel %vm263, %v253, 0
    %v316 = vsel %vm263, %v254, 0
    %v319 = vsel %vm263, %v255, 0
    %v322 = vsel %vm263, %v256, 0
    %v325 = vsel %vm263, %v257, 0
    %v328 = vsel %vm263, %v258, 0
    %v331 = vsel %vm263, %v259, 0
    %v334 = vsel %vm263, %v260, 0
    %vm336 = vcmask 1042432
    %v338 = vsel %vm336, %v262, 0
    %340 = vmatpush.msra.mxu0 0.0
    %341 = vmatpush.msra.mxu0 0.0
    %342 = vmatpush.msra.mxu0 0.0
    %343 = vmatpush.msra.mxu0 0.0
    %344 = vmatpush.msra.mxu0 0.0
    %345 = vmatpush.msra.mxu0 0.0
    %346 = vmatpush.msra.mxu0 0.0
    %347 = vmatpush.msra.mxu0 0.0
    %348 = vmatpush.msra.mxu0 0.0
    %349 = vmatpush.msra.mxu0 0.0
    %350 = vmatpush.msra.mxu0 0.0
    %351 = vmatpush.msra.mxu0 0.0
    %352 = vmatpush.msra.mxu0 0.0
    %353 = vmatpush.msra.mxu0 0.0
    %354 = vmatpush.msra.mxu0 %v338
    %355 = vmatpush.msra.mxu0 %v261
    %356 = vmatmul.f32.gmra.mxu0 %v265
    %v357 = vpop.f32.mrf.mxu0
    %v358 = vadd.f32 0.0, %v357
    %359 = vmatmul.f32.gmra.mxu0 %v268
    %v360 = vpop.f32.mrf.mxu0
    %v361 = vadd.f32 0.0, %v360
    %362 = vmatmul.f32.gmra.mxu0 %v271
    %v363 = vpop.f32.mrf.mxu0
    %v364 = vadd.f32 0.0, %v363
    %365 = vmatmul.f32.gmra.mxu0 %v274
    %v366 = vpop.f32.mrf.mxu0
    %v367 = vadd.f32 0.0, %v366
    %368 = vmatmul.f32.gmra.mxu0 %v277
    %v369 = vpop.f32.mrf.mxu0
    %v370 = vadd.f32 0.0, %v369
    %371 = vmatmul.f32.gmra.mxu0 %v280
    %v372 = vpop.f32.mrf.mxu0
    %v373 = vadd.f32 0.0, %v372
    %374 = vmatmul.f32.gmra.mxu0 %v283
    %v375 = vpop.f32.mrf.mxu0
    %v376 = vadd.f32 0.0, %v375
    %377 = vmatmul.f32.gmra.mxu0 %v286
    %v378 = vpop.f32.mrf.mxu0
    %v379 = vadd.f32 0.0, %v378
    %380 = vmatmul.f32.gmra.mxu0 %v289
    %v381 = vpop.f32.mrf.mxu0
    %v382 = vadd.f32 0.0, %v381
    %383 = vmatmul.f32.gmra.mxu0 %v292
    %v384 = vpop.f32.mrf.mxu0
    %v385 = vadd.f32 0.0, %v384
    %386 = vmatmul.f32.gmra.mxu0 %v295
    %v387 = vpop.f32.mrf.mxu0
    %v388 = vadd.f32 0.0, %v387
    %389 = vmatmul.f32.gmra.mxu0 %v298
    %v390 = vpop.f32.mrf.mxu0
    %v391 = vadd.f32 0.0, %v390
    %392 = vmatmul.f32.gmra.mxu0 %v301
    %v393 = vpop.f32.mrf.mxu0
    %v394 = vadd.f32 0.0, %v393
    %395 = vmatmul.f32.gmra.mxu0 %v304
    %v396 = vpop.f32.mrf.mxu0
    %v397 = vadd.f32 0.0, %v396
    %398 = vmatmul.f32.gmra.mxu0 %v307
    %v399 = vpop.f32.mrf.mxu0
    %v400 = vadd.f32 0.0, %v399
    %401 = vmatmul.f32.gmra.mxu0 %v310
    %v402 = vpop.f32.mrf.mxu0
    %v403 = vadd.f32 0.0, %v402
    %404 = vmatmul.f32.gmra.mxu0 %v313
    %v405 = vpop.f32.mrf.mxu0
    %v406 = vadd.f32 0.0, %v405
    %407 = vmatmul.f32.gmra.mxu0 %v316
    %v408 = vpop.f32.mrf.mxu0
    %v409 = vadd.f32 0.0, %v408
    %410 = vmatmul.f32.gmra.mxu0 %v319
    %v411 = vpop.f32.mrf.mxu0
    %v412 = vadd.f32 0.0, %v411
    %413 = vmatmul.f32.gmra.mxu0 %v322
    %v414 = vpop.f32.mrf.mxu0
    %v415 = vadd.f32 0.0, %v414
    %416 = vmatmul.f32.gmra.mxu0 %v325
    %v417 = vpop.f32.mrf.mxu0
    %v418 = vadd.f32 0.0, %v417
    %419 = vmatmul.f32.gmra.mxu0 %v328
    %v420 = vpop.f32.mrf.mxu0
    %v421 = vadd.f32 0.0, %v420
    %422 = vmatmul.f32.gmra.mxu0 %v331
    %v423 = vpop.f32.mrf.mxu0
    %v424 = vadd.f32 0.0, %v423
    %425 = vmatmul.f32.gmra.mxu0 %v334
    %v426 = vpop.f32.mrf.mxu0
    %v427 = vadd.f32 0.0, %v426
    %428 = vdwg.mxu0
    %vm429 = vcmask 146432
    %v431 = vsel %vm429, %v170, 0
    %v434 = vsel %vm429, %v171, 0
    %v437 = vsel %vm429, %v172, 0
    %v440 = vsel %vm429, %v173, 0
    %v443 = vsel %vm429, %v174, 0
    %v446 = vsel %vm429, %v175, 0
    %v449 = vsel %vm429, %v176, 0
    %v452 = vsel %vm429, %v177, 0
    %v455 = vsel %vm429, %v178, 0
    %v458 = vsel %vm429, %v179, 0
    %v461 = vsel %vm429, %v180, 0
    %v464 = vsel %vm429, %v181, 0
    %v467 = vsel %vm429, %v182, 0
    %v470 = vsel %vm429, %v183, 0
    %v473 = vsel %vm429, %v184, 0
    %v476 = vsel %vm429, %v185, 0
    %v479 = vsel %vm429, %v186, 0
    %v482 = vsel %vm429, %v187, 0
    %v485 = vsel %vm429, %v188, 0
    %v488 = vsel %vm429, %v189, 0
    %v491 = vsel %vm429, %v190, 0
    %v494 = vsel %vm429, %v191, 0
    %v497 = vsel %vm429, %v192, 0
    %v500 = vsel %vm429, %v193, 0
    %vm502 = vcmask 1041408
    %v504 = vsel %vm502, %v235, 0
    %506 = vmatpush.msra.mxu0 0.0
    %507 = vmatpush.msra.mxu0 0.0
    %508 = vmatpush.msra.mxu0 0.0
    %509 = vmatpush.msra.mxu0 0.0
    %510 = vmatpush.msra.mxu0 0.0
    %511 = vmatpush.msra.mxu0 0.0
    %512 = vmatpush.msra.mxu0 0.0
    %513 = vmatpush.msra.mxu0 0.0
    %514 = vmatpush.msra.mxu0 0.0
    %515 = vmatpush.msra.mxu0 0.0
    %516 = vmatpush.msra.mxu0 0.0
    %517 = vmatpush.msra.mxu0 0.0
    %518 = vmatpush.msra.mxu0 0.0
    %519 = vmatpush.msra.mxu0 %v504
    %520 = vmatpush.msra.mxu0 %v232
    %521 = vmatpush.msra.mxu0 %v229
    %522 = vmatmul.f32.gmra.mxu0 %v431
    %v523 = vpop.f32.mrf.mxu0
    %v524 = vadd.f32 %v358, %v523
    %525 = vmatmul.f32.gmra.mxu0 %v434
    %v526 = vpop.f32.mrf.mxu0
    %v527 = vadd.f32 %v361, %v526
    %528 = vmatmul.f32.gmra.mxu0 %v437
    %v529 = vpop.f32.mrf.mxu0
    %v530 = vadd.f32 %v364, %v529
    %531 = vmatmul.f32.gmra.mxu0 %v440
    %v532 = vpop.f32.mrf.mxu0
    %v533 = vadd.f32 %v367, %v532
    %534 = vmatmul.f32.gmra.mxu0 %v443
    %v535 = vpop.f32.mrf.mxu0
    %v536 = vadd.f32 %v370, %v535
    %537 = vmatmul.f32.gmra.mxu0 %v446
    %v538 = vpop.f32.mrf.mxu0
    %v539 = vadd.f32 %v373, %v538
    %540 = vmatmul.f32.gmra.mxu0 %v449
    %v541 = vpop.f32.mrf.mxu0
    %v542 = vadd.f32 %v376, %v541
    %543 = vmatmul.f32.gmra.mxu0 %v452
    %v544 = vpop.f32.mrf.mxu0
    %v545 = vadd.f32 %v379, %v544
    %546 = vmatmul.f32.gmra.mxu0 %v455
    %v547 = vpop.f32.mrf.mxu0
    %v548 = vadd.f32 %v382, %v547
    %549 = vmatmul.f32.gmra.mxu0 %v458
    %v550 = vpop.f32.mrf.mxu0
    %v551 = vadd.f32 %v385, %v550
    %552 = vmatmul.f32.gmra.mxu0 %v461
    %v553 = vpop.f32.mrf.mxu0
    %v554 = vadd.f32 %v388, %v553
    %555 = vmatmul.f32.gmra.mxu0 %v464
    %v556 = vpop.f32.mrf.mxu0
    %v557 = vadd.f32 %v391, %v556
    %558 = vmatmul.f32.gmra.mxu0 %v467
    %v559 = vpop.f32.mrf.mxu0
    %v560 = vadd.f32 %v394, %v559
    %561 = vmatmul.f32.gmra.mxu0 %v470
    %v562 = vpop.f32.mrf.mxu0
    %v563 = vadd.f32 %v397, %v562
    %564 = vmatmul.f32.gmra.mxu0 %v473
    %v565 = vpop.f32.mrf.mxu0
    %v566 = vadd.f32 %v400, %v565
    %567 = vmatmul.f32.gmra.mxu0 %v476
    %v568 = vpop.f32.mrf.mxu0
    %v569 = vadd.f32 %v403, %v568
    %570 = vmatmul.f32.gmra.mxu0 %v479
    %v571 = vpop.f32.mrf.mxu0
    %v572 = vadd.f32 %v406, %v571
    %573 = vmatmul.f32.gmra.mxu0 %v482
    %v574 = vpop.f32.mrf.mxu0
    %v575 = vadd.f32 %v409, %v574
    %576 = vmatmul.f32.gmra.mxu0 %v485
    %v577 = vpop.f32.mrf.mxu0
    %v578 = vadd.f32 %v412, %v577
    %579 = vmatmul.f32.gmra.mxu0 %v488
    %v580 = vpop.f32.mrf.mxu0
    %v581 = vadd.f32 %v415, %v580
    %582 = vmatmul.f32.gmra.mxu0 %v491
    %v583 = vpop.f32.mrf.mxu0
    %v584 = vadd.f32 %v418, %v583
    %585 = vmatmul.f32.gmra.mxu0 %v494
    %v586 = vpop.f32.mrf.mxu0
    %v587 = vadd.f32 %v421, %v586
    %588 = vmatmul.f32.gmra.mxu0 %v497
    %v589 = vpop.f32.mrf.mxu0
    %v590 = vadd.f32 %v424, %v589
    %591 = vmatmul.f32.gmra.mxu0 %v500
    %v592 = vpop.f32.mrf.mxu0
    %v593 = vadd.f32 %v427, %v592
    %594 = vdwg.mxu0
    %v595 = vld [vmem:[%s5] sm:$0x1]
    %v597 = vperm.slane %v595, 0
    %v599 = vadd.f32 %v524, %v597
    %v600 = vadd.f32 %v527, %v597
    %v601 = vadd.f32 %v530, %v597
    %v602 = vadd.f32 %v533, %v597
    %v603 = vadd.f32 %v536, %v597
    %v604 = vadd.f32 %v539, %v597
    %v605 = vadd.f32 %v542, %v597
    %v606 = vadd.f32 %v545, %v597
    %v607 = vadd.f32 %v548, %v597
    %v608 = vadd.f32 %v551, %v597
    %v609 = vadd.f32 %v554, %v597
    %v610 = vadd.f32 %v557, %v597
    %v611 = vadd.f32 %v560, %v597
    %v612 = vadd.f32 %v563, %v597
    %v613 = vadd.f32 %v566, %v597
    %v614 = vadd.f32 %v569, %v597
    %v615 = vadd.f32 %v572, %v597
    %v616 = vadd.f32 %v575, %v597
    %v617 = vadd.f32 %v578, %v597
    %v618 = vadd.f32 %v581, %v597
    %v619 = vadd.f32 %v584, %v597
    %v620 = vadd.f32 %v587, %v597
    %v621 = vadd.f32 %v590, %v597
    %v622 = vadd.f32 %v593, %v597
    %v623 = vmax.f32 %v599, 0.0
    %v624 = vmax.f32 %v600, 0.0
    %v625 = vmax.f32 %v601, 0.0
    %v626 = vmax.f32 %v602, 0.0
    %v627 = vmax.f32 %v603, 0.0
    %v628 = vmax.f32 %v604, 0.0
    %v629 = vmax.f32 %v605, 0.0
    %v630 = vmax.f32 %v606, 0.0
    %v631 = vmax.f32 %v607, 0.0
    %v632 = vmax.f32 %v608, 0.0
    %v633 = vmax.f32 %v609, 0.0
    %v634 = vmax.f32 %v610, 0.0
    %v635 = vmax.f32 %v611, 0.0
    %v636 = vmax.f32 %v612, 0.0
    %v637 = vmax.f32 %v613, 0.0
    %v638 = vmax.f32 %v614, 0.0
    %v639 = vmax.f32 %v615, 0.0
    %v640 = vmax.f32 %v616, 0.0
    %v641 = vmax.f32 %v617, 0.0
    %v642 = vmax.f32 %v618, 0.0
    %v643 = vmax.f32 %v619, 0.0
    %v644 = vmax.f32 %v620, 0.0
    %v645 = vmax.f32 %v621, 0.0
    %v646 = vmax.f32 %v622, 0.0
    %v647 = vmax.f32 %v623, %v625
    %v648 = vmax.f32 %v624, %v626
    %v649 = vmax.f32 %v647, %v627
    %v650 = vmax.f32 %v648, %v628
    %v651 = vmax.f32 %v649, %v629
    %v652 = vmax.f32 %v650, %v630
    %v653 = vmax.f32 %v651, %v631
    %v654 = vmax.f32 %v652, %v632
    %v655 = vmax.f32 %v653, %v633
    %v656 = vmax.f32 %v654, %v634
    %v657 = vmax.f32 %v655, %v635
    %v658 = vmax.f32 %v656, %v636
    %v659 = vmax.f32 %v657, %v637
    %v660 = vmax.f32 %v658, %v638
    %v661 = vmax.f32 %v659, %v639
    %v662 = vmax.f32 %v660, %v640
    %v663 = vmax.f32 %v661, %v641
    %v664 = vmax.f32 %v662, %v642
    %v665 = vmax.f32 %v663, %v643
    %v666 = vmax.f32 %v664, %v644
    %v667 = vmax.f32 %v665, %v645
    %v668 = vmax.f32 %v666, %v646
    %669 = vst [vmem:[#allocation2] sm:$0xff] %v667
    %670 = vst [vmem:[#allocation2 + $0x8] sm:$0xff] %v668
    // Predicated region
    $region26: #{item_encoder_forward.1} parent=1 // pred_check
      _
    $region27: #{item_encoder_forward.1} parent=1 // pred_check_branch
      %672 = sbr.rel (0) target = $region29
    $region28: #{item_encoder_forward.1} parent=1 // pred_region
      %674 = vsyncadd [#allocation3], 0
      %s675 = sshll.u32 [#allocation2], 4
      %s676 = int_to_ptr.vmem [resolvable:$true] %s675
      %s677 = sshll.u32 %s6, 4
      %s678 = int_to_ptr.hbm [resolvable:$true] %s677
      %683 = dma.vmem_to_hbm [thread:$0]  %s676, 256, %s678, [#allocation3], 128, 128, 8
    $region29: #{item_encoder_forward.1} parent=1 // pred_fallthru
      _
    // Predicated region
    $region30: #{item_encoder_forward.1} parent=1 // pred_check
      _
    $region31: #{item_encoder_forward.1} parent=1 // pred_check_branch
      %685 = sbr.rel (0) target = $region33
    $region32: #{item_encoder_forward.1} parent=1 // pred_region
      %687 = dma.done [#allocation3], 256
    $region33: #{item_encoder_forward.1} parent=1 // pred_fallthru
      _
    %688 = vsyncpa [#allocation3], 1

</llo_original>
